<compile_context>
chip_gen: v5e
topology: v5e:2x2
jax: 0.10.0
libtpu: 0.0.40
codegen_flags: <defaults>
</compile_context>

<pallas_src>
import functools

import jax
import jax.numpy as jnp
from jax import lax
from jax.experimental import pallas as pl
from jax.experimental.pallas import tpu as pltpu

_MIB = 1024 * 1024


def _round_up(x, m):
    return (x + m - 1) // m * m


def _gelu_exact(x):
    # PyTorch nn.GELU default = exact erf-based GELU (computed in f32).
    return 0.5 * x * (1.0 + lax.erf(x * 0.7071067811865476))


def _maybe_pad2d(a, rows, cols):
    r, c = a.shape
    if r == rows and c == cols:          # static check -> no copy in hot path
        return a
    return jnp.zeros((rows, cols), a.dtype).at[:r, :c].set(a)


def _vmem_limit_bytes(est):
    return int(min(128 * _MIB, max(32 * _MIB, est + 8 * _MIB)))


# --------------------------------------------------------------------------
# Kernels
# --------------------------------------------------------------------------
def _mlp_kernel_resident(x_ref, w1_ref, b1_ref, w2_ref, b2_ref, o_ref):
    # Full W1/W2 resident in VMEM; single pass over the hidden dim.
    h = jnp.dot(x_ref[...], w1_ref[...], preferred_element_type=jnp.float32)
    h = _gelu_exact(h + b1_ref[...].astype(jnp.float32))
    out = jnp.dot(h.astype(w2_ref.dtype), w2_ref[...],
                  preferred_element_type=jnp.float32)
    o_ref[...] = (out + b2_ref[...].astype(jnp.float32)).astype(o_ref.dtype)


def _mlp_kernel_tiled_f32out(x_ref, w1_ref, b1_ref, w2_ref, b2_ref, o_ref):
    # (rows, hidden) grid; f32 output block is resident across the hidden axis
    # and doubles as the accumulator (no scratch needed).
    h_idx = pl.program_id(1)

    @pl.when(h_idx == 0)
    def _():
        o_ref[...] = jnp.zeros_like(o_ref)

    h = jnp.dot(x_ref[...], w1_ref[...], preferred_element_type=jnp.float32)
    h = _gelu_exact(h + b1_ref[...].astype(jnp.float32))
    o_ref[...] += jnp.dot(h.astype(w2_ref.dtype), w2_ref[...],
                          preferred_element_type=jnp.float32)

    @pl.when(h_idx == pl.num_programs(1) - 1)
    def _():
        o_ref[...] += b2_ref[...].astype(o_ref.dtype)


def _mlp_kernel_tiled_acc(x_ref, w1_ref, b1_ref, w2_ref, b2_ref, o_ref, acc_ref):
    # Same as above but with an explicit f32 accumulator for narrow outputs.
    h_idx = pl.program_id(1)

    @pl.when(h_idx == 0)
    def _():
        acc_ref[...] = jnp.zeros_like(acc_ref)

    h = jnp.dot(x_ref[...], w1_ref[...], preferred_element_type=jnp.float32)
    h = _gelu_exact(h + b1_ref[...].astype(jnp.float32))
    acc_ref[...] += jnp.dot(h.astype(w2_ref.dtype), w2_ref[...],
                            preferred_element_type=jnp.float32)

    @pl.when(h_idx == pl.num_programs(1) - 1)
    def _():
        o_ref[...] = (acc_ref[...]
                      + b2_ref[...].astype(jnp.float32)).astype(o_ref.dtype)


# --------------------------------------------------------------------------
# Wrapper
# --------------------------------------------------------------------------
@functools.partial(
    jax.jit,
    static_argnames=("compute_dtype", "tm", "th", "max_resident_bytes"))
def mlp_forward(x, w1, b1, w2, b2, *, compute_dtype=jnp.bfloat16,
                tm=512, th=512, max_resident_bytes=40 * _MIB):
    """x: (..., D_in) -> (..., D_out). Weights stored as (in, out)."""
    orig_dtype = x.dtype
    D_in = x.shape[-1]
    M = x.size // D_in
    H = w1.shape[1]
    D_out = w2.shape[1]

    cdt = jnp.dtype(compute_dtype) if compute_dtype is not None else jnp.dtype(orig_dtype)
    csize = cdt.itemsize
    osize = jnp.dtype(orig_dtype).itemsize
    bsize = jnp.dtype(b1.dtype).itemsize

    # ---- cast to the MXU compute dtype (no-op when already matching) ----
    x2d = x.reshape(M, D_in)
    if x2d.dtype != cdt:
        x2d = x2d.astype(cdt)
    w1c = w1 if w1.dtype == cdt else w1.astype(cdt)
    w2c = w2 if w2.dtype == cdt else w2.astype(cdt)
    b1_2d = b1.reshape(1, H)          # biases stay in their own (f32) dtype
    b2_2d = b2.reshape(1, D_out)

    # ---- tile / padding geometry (static; skipped for standard ViT dims) ----
    tm_eff = min(tm, _round_up(M, 8))
    if M > 256 and _round_up(M, tm_eff) // tm_eff < 2:
        # v7x megacore: make sure the "parallel" row axis spans both cores.
        tm_eff = _round_up((M + 1) // 2, 8)
    M_p = _round_up(M, tm_eff)
    D_in_p = _round_up(D_in, 128)
    D_out_p = _round_up(D_out, 128)
    H_128 = _round_up(H, 128)

    x2d = _maybe_pad2d(x2d, M_p, D_in_p)
    b2p = _maybe_pad2d(b2_2d, 1, D_out_p)

    num_row_tiles = M_p // tm_eff
    flops = 2 * M_p * (D_in_p * H_128 + H_128 * D_out_p)
    transcend = M_p * H_128

    # ---- structure selection: weights-resident vs (rows, hidden) streaming ----
    resident_bytes = (
        2 * (D_in_p * H_128 + H_128 * D_out_p) * csize   # W1,W2 (double-buffer alloc)
        + 2 * (H_128 + D_out_p) * bsize                  # biases
        + 2 * tm_eff * D_in_p * csize                    # x tiles
        + 2 * tm_eff * D_out_p * osize)                  # out tiles
    use_resident = resident_bytes <= max_resident_bytes

    if use_resident:
        H_p = H_128
        w1p = _maybe_pad2d(w1c, D_in_p, H_p)
        w2p = _maybe_pad2d(w2c, H_p, D_out_p)
        b1p = _maybe_pad2d(b1_2d, 1, H_p)

        cost = pl.CostEstimate(
            flops=flops, transcendentals=transcend,
            bytes_accessed=(M_p * D_in_p * csize
                            + (D_in_p * H_p + H_p * D_out_p) * csize
                            + (H_p + D_out_p) * bsize
                            + M_p * D_out_p * osize))

        out2d = pl.pallas_call(
            _mlp_kernel_resident,
            out_shape=jax.ShapeDtypeStruct((M_p, D_out_p), orig_dtype),
            grid_spec=pltpu.PrefetchScalarGridSpec(
                num_scalar_prefetch=0,
                grid=(num_row_tiles,),
                in_specs=[
                    pl.BlockSpec((tm_eff, D_in_p), lambda i: (i, 0)),
                    pl.BlockSpec((D_in_p, H_p), lambda i: (0, 0)),
                    pl.BlockSpec((1, H_p), lambda i: (0, 0)),
                    pl.BlockSpec((H_p, D_out_p), lambda i: (0, 0)),
                    pl.BlockSpec((1, D_out_p), lambda i: (0, 0)),
                ],
                out_specs=pl.BlockSpec((tm_eff, D_out_p), lambda i: (i, 0)),
            ),
            compiler_params=pltpu.CompilerParams(
                dimension_semantics=("parallel",),
                vmem_limit_bytes=_vmem_limit_bytes(resident_bytes)),
            cost_estimate=cost,
        )(x2d, w1p, b1p, w2p, b2p)
    else:
        th_eff = min(th, H_128)
        H_p = _round_up(H, th_eff)
        w1p = _maybe_pad2d(w1c, D_in_p, H_p)
        w2p = _maybe_pad2d(w2c, H_p, D_out_p)
        b1p = _maybe_pad2d(b1_2d, 1, H_p)

        use_acc = jnp.dtype(orig_dtype) != jnp.dtype(jnp.float32)
        kernel = _mlp_kernel_tiled_acc if use_acc else _mlp_kernel_tiled_f32out
        scratch = ([pltpu.VMEM((tm_eff, D_out_p), jnp.float32)]
                   if use_acc else [])

        tiled_bytes = (
            2 * tm_eff * D_in_p * csize
            + 2 * (D_in_p * th_eff + th_eff * D_out_p) * csize
            + 2 * (th_eff + D_out_p) * bsize
            + 2 * tm_eff * D_out_p * osize
            + (tm_eff * D_out_p * 4 if use_acc else 0))

        cost = pl.CostEstimate(
            flops=flops, transcendentals=transcend,
            bytes_accessed=(M_p * D_in_p * csize
                            # weights are re-streamed once per row tile:
                            + num_row_tiles * (D_in_p * H_p + H_p * D_out_p) * csize
                            + num_row_tiles * (H_p + D_out_p) * bsize
                            + M_p * D_out_p * osize))

        out2d = pl.pallas_call(
            kernel,
            out_shape=jax.ShapeDtypeStruct((M_p, D_out_p), orig_dtype),
            grid_spec=pltpu.PrefetchScalarGridSpec(
                num_scalar_prefetch=0,
                grid=(num_row_tiles, H_p // th_eff),
                in_specs=[
                    pl.BlockSpec((tm_eff, D_in_p), lambda i, h: (i, 0)),
                    pl.BlockSpec((D_in_p, th_eff), lambda i, h: (0, h)),
                    pl.BlockSpec((1, th_eff), lambda i, h: (0, h)),
                    pl.BlockSpec((th_eff, D_out_p), lambda i, h: (h, 0)),
                    pl.BlockSpec((1, D_out_p), lambda i, h: (0, 0)),
                ],
                out_specs=pl.BlockSpec((tm_eff, D_out_p), lambda i, h: (i, 0)),
                scratch_shapes=scratch,
            ),
            compiler_params=pltpu.CompilerParams(
                dimension_semantics=("parallel", "arbitrary"),
                vmem_limit_bytes=_vmem_limit_bytes(tiled_bytes)),
            cost_estimate=cost,
        )(x2d, w1p, b1p, w2p, b2p)

    out = out2d[:M, :D_out]
    return out.reshape(*x.shape[:-1], D_out)


def init_mlp_params(key, in_features, hidden_features, out_features,
                    dtype=jnp.float32):
    """Deterministic synthetic params matching nn.Linear init.

    torch stores fc.weight as (out, in); we keep the transposed (in, out)
    layout so the kernel does x @ W directly.
    """
    k1, k2, k3, k4 = jax.random.split(key, 4)
    lim1 = 1.0 / jnp.sqrt(jnp.array(in_features, dtype))
    lim2 = 1.0 / jnp.sqrt(jnp.array(hidden_features, dtype))
    w1 = jax.random.uniform(k1, (in_features, hidden_features), dtype, -lim1, lim1)
    b1 = jax.random.uniform(k2, (hidden_features,), dtype, -lim1, lim1)
    w2 = jax.random.uniform(k3, (hidden_features, out_features), dtype, -lim2, lim2)
    b2 = jax.random.uniform(k4, (out_features,), dtype, -lim2, lim2)
    return w1, b1, w2, b2


def _ref_mlp(x, w1, b1, w2, b2):
    # Pure-JAX reference: fc1 -> exact GELU -> fc2 (dropout p=0 is identity).
    return jnp.dot(jax.nn.gelu(jnp.dot(x, w1) + b1, approximate=False), w2) + b2


if __name__ == "__main__":
    key = jax.random.PRNGKey(0)
    kx, kp = jax.random.split(key)

    # ---- test 1: tiny MLP, weights-resident structure ----
    B, N = 2, 8                    # batch, tokens
    D_in, H, D_out = 32, 64, 32    # in_features, hidden_features, out_features
    x = jax.random.normal(kx, (B, N, D_in), jnp.float32)
    w1, b1, w2, b2 = init_mlp_params(kp, D_in, H, D_out)
    ref = _ref_mlp(x, w1, b1, w2, b2)

    out_bf16 = mlp_forward(x, w1, b1, w2, b2)                  # default bf16 MXU path
    jax.block_until_ready(out_bf16)
    assert out_bf16.shape == (B, N, D_out)
    assert jnp.allclose(out_bf16, ref, atol=5e-2, rtol=5e-2)   # bf16 matmul tolerance

    out_f32 = mlp_forward(x, w1, b1, w2, b2, compute_dtype=jnp.float32)
    jax.block_until_ready(out_f32)
    assert jnp.allclose(out_f32, ref, atol=1e-5, rtol=1e-5)

    # ---- test 2: forced (rows, hidden) reduction grid (multi-step hidden) ----
    D_in2, H2, D_out2 = 128, 512, 128
    kx2, kp2 = jax.random.split(kp)
    x2 = jax.random.normal(kx2, (B, N, D_in2), jnp.float32)
    w1b, b1b, w2b, b2b = init_mlp_params(kp2, D_in2, H2, D_out2)
    ref2 = _ref_mlp(x2, w1b, b1b, w2b, b2b)

    out2 = mlp_forward(x2, w1b, b1b, w2b, b2b, compute_dtype=jnp.float32,
                       th=256, max_resident_bytes=0)           # f32-out, no-acc variant
    jax.block_until_ready(out2)
    assert jnp.allclose(out2, ref2, atol=1e-4, rtol=1e-4)

    out2_bf16 = mlp_forward(x2.astype(jnp.bfloat16), w1b, b1b, w2b, b2b,
                            th=256, max_resident_bytes=0)      # bf16-out, acc-scratch variant
    jax.block_until_ready(out2_bf16)
    assert jnp.allclose(out2_bf16.astype(jnp.float32), ref2, atol=1e-1, rtol=1e-1)

    print("KERNEL_OK")
</pallas_src>

<mosaic_0001>
module attributes {stable_mosaic.version = 11 : i64} {
  func.func @_mlp_kernel_resident(%arg0: i32, %arg1: memref<16x128xbf16, #tpu.memory_space<vmem>>, %arg2: memref<128x128xbf16, #tpu.memory_space<vmem>>, %arg3: memref<1x128xf32, #tpu.memory_space<vmem>>, %arg4: memref<128x128xbf16, #tpu.memory_space<vmem>>, %arg5: memref<1x128xf32, #tpu.memory_space<vmem>>, %arg6: memref<16x128xf32, #tpu.memory_space<vmem>>) attributes {dimension_semantics = [#tpu.dimension_semantics<parallel>], iteration_bounds = array<i64: 1>, scalar_prefetch = 0 : i64, scratch_operands = 0 : i64, tpu.core_type = #tpu.core_type<tc>, window_params = [{transform_indices = @transform_0, window_bounds = array<i64: 16, 128>}, {pipeline_mode = #tpu.pipeline_mode<synchronous>, transform_indices = @transform_1, window_bounds = array<i64: 128, 128>}, {pipeline_mode = #tpu.pipeline_mode<synchronous>, transform_indices = @transform_2, window_bounds = array<i64: 1, 128>}, {pipeline_mode = #tpu.pipeline_mode<synchronous>, transform_indices = @transform_3, window_bounds = array<i64: 128, 128>}, {pipeline_mode = #tpu.pipeline_mode<synchronous>, transform_indices = @transform_4, window_bounds = array<i64: 1, 128>}, {transform_indices = @transform_5, window_bounds = array<i64: 16, 128>}]} {
    %c0 = arith.constant 0 : index
    %c0_0 = arith.constant 0 : index
    %0 = vector.load %arg1[%c0, %c0_0] : memref<16x128xbf16, #tpu.memory_space<vmem>>, vector<16x128xbf16>
    %c0_1 = arith.constant 0 : index
    %c0_2 = arith.constant 0 : index
    %1 = vector.load %arg2[%c0_1, %c0_2] : memref<128x128xbf16, #tpu.memory_space<vmem>>, vector<128x128xbf16>
    %cst = arith.constant dense<0.000000e+00> : vector<16x128xf32>
    %2 = tpu.matmul %0, %1, %cst {dimension_numbers = #tpu.dot_dimension_numbers<[1], [0], [0], [1], [0, 0, 1, 1], [], []>} : vector<16x128xbf16>, vector<128x128xbf16>, vector<16x128xf32> -> vector<16x128xf32>
    %c0_3 = arith.constant 0 : index
    %c0_4 = arith.constant 0 : index
    %3 = vector.load %arg3[%c0_3, %c0_4] : memref<1x128xf32, #tpu.memory_space<vmem>>, vector<1x128xf32>
    %4 = vector.broadcast %3 : vector<1x128xf32> to vector<16x128xf32>
    %5 = arith.addf %2, %4 : vector<16x128xf32>
    %cst_5 = arith.constant 5.000000e-01 : f32
    %6 = vector.broadcast %cst_5 : f32 to vector<16x128xf32>
    %7 = arith.mulf %6, %5 : vector<16x128xf32>
    %cst_6 = arith.constant 0.707106769 : f32
    %8 = vector.broadcast %cst_6 : f32 to vector<16x128xf32>
    %9 = arith.mulf %5, %8 : vector<16x128xf32>
    %10 = math.erf %9 : vector<16x128xf32>
    %cst_7 = arith.constant 1.000000e+00 : f32
    %11 = vector.broadcast %cst_7 : f32 to vector<16x128xf32>
    %12 = arith.addf %11, %10 : vector<16x128xf32>
    %13 = arith.mulf %7, %12 : vector<16x128xf32>
    %14 = arith.truncf %13 : vector<16x128xf32> to vector<16x128xbf16>
    %c0_8 = arith.constant 0 : index
    %c0_9 = arith.constant 0 : index
    %15 = vector.load %arg4[%c0_8, %c0_9] : memref<128x128xbf16, #tpu.memory_space<vmem>>, vector<128x128xbf16>
    %cst_10 = arith.constant dense<0.000000e+00> : vector<16x128xf32>
    %16 = tpu.matmul %14, %15, %cst_10 {dimension_numbers = #tpu.dot_dimension_numbers<[1], [0], [0], [1], [0, 0, 1, 1], [], []>} : vector<16x128xbf16>, vector<128x128xbf16>, vector<16x128xf32> -> vector<16x128xf32>
    %c0_11 = arith.constant 0 : index
    %c0_12 = arith.constant 0 : index
    %17 = vector.load %arg5[%c0_11, %c0_12] : memref<1x128xf32, #tpu.memory_space<vmem>>, vector<1x128xf32>
    %18 = vector.broadcast %17 : vector<1x128xf32> to vector<16x128xf32>
    %19 = arith.addf %16, %18 : vector<16x128xf32>
    %c0_13 = arith.constant 0 : index
    %c0_14 = arith.constant 0 : index
    %20 = vector.load %arg6[%c0_13, %c0_14] : memref<16x128xf32, #tpu.memory_space<vmem>>, vector<16x128xf32>
    tpu.vector_store %arg6[%c0_13, %c0_14], %19 {strides = array<i32>} : memref<16x128xf32, #tpu.memory_space<vmem>>, vector<16x128xf32>,
    return
  }
  func.func @transform_0(%arg0: i32) -> (i32, i32) {
    %c0_i32 = arith.constant 0 : i32
    %c0_i32_0 = arith.constant 0 : i32
    return %arg0, %c0_i32 : i32, i32
  }
  func.func @transform_1(%arg0: i32) -> (i32, i32) {
    %c0_i32 = arith.constant 0 : i32
    %c0_i32_0 = arith.constant 0 : i32
    %c0_i32_1 = arith.constant 0 : i32
    return %c0_i32, %c0_i32_0 : i32, i32
  }
  func.func @transform_2(%arg0: i32) -> (i32, i32) {
    %c0_i32 = arith.constant 0 : i32
    %c0_i32_0 = arith.constant 0 : i32
    %c0_i32_1 = arith.constant 0 : i32
    return %c0_i32, %c0_i32_0 : i32, i32
  }
  func.func @transform_3(%arg0: i32) -> (i32, i32) {
    %c0_i32 = arith.constant 0 : i32
    %c0_i32_0 = arith.constant 0 : i32
    %c0_i32_1 = arith.constant 0 : i32
    return %c0_i32, %c0_i32_0 : i32, i32
  }
  func.func @transform_4(%arg0: i32) -> (i32, i32) {
    %c0_i32 = arith.constant 0 : i32
    %c0_i32_0 = arith.constant 0 : i32
    %c0_i32_1 = arith.constant 0 : i32
    return %c0_i32, %c0_i32_0 : i32, i32
  }
  func.func @transform_5(%arg0: i32) -> (i32, i32) {
    %c0_i32 = arith.constant 0 : i32
    %c0_i32_0 = arith.constant 0 : i32
    return %arg0, %c0_i32 : i32, i32
  }
}

</mosaic_0001>

<llo_original>
// kernel: mlp_forward.1
$region0: #{mlp_forward.1}
  #allocation0 [shape = 'u32[]', space=smem, size = 0x4, offset = 0x4, fixed_abs, tag = 'smem constant byte address 0x4 - core index']
  #allocation1 [shape = 'u32[72,128]{1,0:T(1,128)}', space=vmem, size = 0x9000, scoped, tag = 'internal scratch']
  %s0 = inlined_call_operand.vmem [shape: bf16[16,128], index: 0, kind: input, shape index: {}]
  %s1 = inlined_call_operand.vmem [shape: bf16[128,128], index: 1, kind: input, shape index: {}]
  %s2 = inlined_call_operand.vmem [shape: f32[1,128], index: 2, kind: input, shape index: {}]
  %s3 = inlined_call_operand.vmem [shape: bf16[128,128], index: 3, kind: input, shape index: {}]
  %s4 = inlined_call_operand.vmem [shape: f32[1,128], index: 4, kind: input, shape index: {}]
  %s5 = inlined_call_operand.vmem [shape: f32[16,128], index: 5, kind: output, shape index: {}]
  %s6 = sld [smem:[#allocation0]]
  $region30: #{mlp_forward.1} parent=0
    _
  %s8 = ssub.s32 1, %s6
  %s9 = scalar_select 0, %s8, %s6
  // Predicated region
  $region2: #{mlp_forward.1} parent=0 // pred_check
    _
  $region3: #{mlp_forward.1} parent=0 // pred_check_branch
    %11 = sbr.rel (0) target = $region5
  $region4: #{mlp_forward.1} parent=0 // pred_region
    _
  $region5: #{mlp_forward.1} parent=0 // pred_fallthru
    _
  // Predicated region
  $region6: #{mlp_forward.1} parent=0 // pred_check
    _
  $region7: #{mlp_forward.1} parent=0 // pred_check_branch
    %13 = sbr.rel (0) target = $region9
  $region8: #{mlp_forward.1} parent=0 // pred_region
    _
  $region9: #{mlp_forward.1} parent=0 // pred_fallthru
    _
  // Predicated region
  $region10: #{mlp_forward.1} parent=0 // pred_check
    _
  $region11: #{mlp_forward.1} parent=0 // pred_check_branch
    %15 = sbr.rel (0) target = $region13
  $region12: #{mlp_forward.1} parent=0 // pred_region
    _
  $region13: #{mlp_forward.1} parent=0 // pred_fallthru
    _
  // Predicated region
  $region14: #{mlp_forward.1} parent=0 // pred_check
    _
  $region15: #{mlp_forward.1} parent=0 // pred_check_branch
    %17 = sbr.rel (0) target = $region17
  $region16: #{mlp_forward.1} parent=0 // pred_region
    _
  $region17: #{mlp_forward.1} parent=0 // pred_fallthru
    _
  // Predicated region
  $region18: #{mlp_forward.1} parent=0 // pred_check
    _
  $region19: #{mlp_forward.1} parent=0 // pred_check_branch
    %19 = sbr.rel (0) target = $region21
  $region20: #{mlp_forward.1} parent=0 // pred_region
    _
  $region21: #{mlp_forward.1} parent=0 // pred_fallthru
    _
  %v20 = vld [vmem:[%s0] sm:$0xf]
  %v21 = vld [vmem:[%s0 + $0x4] sm:$0xf]
  %v22 = vld [vmem:[%s1] sm:$0xf]
  %v23 = vld [vmem:[%s1 + $0x4] sm:$0xf]
  %v24 = vld [vmem:[%s1 + $0x8] sm:$0xf]
  %v25 = vld [vmem:[%s1 + $0xc] sm:$0xf]
  %v26 = vld [vmem:[%s1 + $0x10] sm:$0xf]
  %v27 = vld [vmem:[%s1 + $0x14] sm:$0xf]
  %v28 = vld [vmem:[%s1 + $0x18] sm:$0xf]
  %v29 = vld [vmem:[%s1 + $0x1c] sm:$0xf]
  %v30 = vld [vmem:[%s1 + $0x20] sm:$0xf]
  %v31 = vld [vmem:[%s1 + $0x24] sm:$0xf]
  %v32 = vld [vmem:[%s1 + $0x28] sm:$0xf]
  %v33 = vld [vmem:[%s1 + $0x2c] sm:$0xf]
  %v34 = vld [vmem:[%s1 + $0x30] sm:$0xf]
  %v35 = vld [vmem:[%s1 + $0x34] sm:$0xf]
  %v36 = vld [vmem:[%s1 + $0x38] sm:$0xf]
  %v37 = vld [vmem:[%s1 + $0x3c] sm:$0xf]
  %v38 = vld [vmem:[%s2] sm:$0x1]
  %v40 = vperm.slane %v38, 0
  %v44 = vunpack.c.l.b16 %v20
  %v45 = vunpack.c.l.b16 %v21
  %v46 = vpack.c.b16 %v45, %v44
  %v64 = vunpack.c.l.b16 %v22
  %v65 = vunpack.c.l.b16 %v23
  %v66 = vunpack.c.l.b16 %v24
  %v67 = vunpack.c.l.b16 %v25
  %v68 = vunpack.c.l.b16 %v26
  %v69 = vunpack.c.l.b16 %v27
  %v70 = vunpack.c.l.b16 %v28
  %v71 = vunpack.c.l.b16 %v29
  %v72 = vunpack.c.l.b16 %v30
  %v73 = vunpack.c.l.b16 %v31
  %v74 = vunpack.c.l.b16 %v32
  %v75 = vunpack.c.l.b16 %v33
  %v76 = vunpack.c.l.b16 %v34
  %v77 = vunpack.c.l.b16 %v35
  %v78 = vunpack.c.l.b16 %v36
  %v79 = vunpack.c.l.b16 %v37
  %v80 = vpack.c.b16 %v65, %v64
  %v81 = vpack.c.b16 %v67, %v66
  %v82 = vpack.c.b16 %v69, %v68
  %v83 = vpack.c.b16 %v71, %v70
  %v84 = vpack.c.b16 %v73, %v72
  %v85 = vpack.c.b16 %v75, %v74
  %v86 = vpack.c.b16 %v77, %v76
  %v87 = vpack.c.b16 %v79, %v78
  %96 = vmatpush.bf16.msra.mxu0 %v87
  %97 = vmatpush.bf16.msra.mxu0 %v86
  %98 = vmatpush.bf16.msra.mxu0 %v85
  %99 = vmatpush.bf16.msra.mxu0 %v84
  %100 = vmatpush.bf16.msra.mxu0 %v83
  %101 = vmatpush.bf16.msra.mxu0 %v82
  %102 = vmatpush.bf16.msra.mxu0 %v81
  %103 = vmatpush.bf16.msra.mxu0 %v80
  %104 = vmatmul.bf16.gmra.mxu0 %v46
  %v105 = vpop.f32.mrf.mxu0
  %v106 = vadd.f32 %v40, %v105
  %v107 = vpop.f32.mrf.mxu0
  %v108 = vadd.f32 %v40, %v107
  %109 = vdwg.mxu0
  %v110 = vmul.f32 %v106, 0.5
  %v111 = vmul.f32 %v108, 0.5
  %v112 = vmul.f32 %v106, 0.70710677
  %v113 = vmul.f32 %v108, 0.70710677
  %v114 = vmul.f32 %v112, %v112
  %v115 = vmin.f32 16.0, %v114
  %v116 = vmul.f32 %v115, 2.1237322e-06
  %v117 = vadd.f32 %v116, 0.00028619796
  %v118 = vmul.f32 %v115, %v117
  %v119 = vadd.f32 %v118, 0.0036580483
  %v120 = vmul.f32 %v115, %v119
  %v121 = vadd.f32 %v120, 0.05243302
  %v122 = vmul.f32 %v115, %v121
  %v123 = vadd.f32 %v122, 0.18741608
  %v124 = vmul.f32 %v115, %v123
  %v125 = vadd.f32 %v124, 1.1283791
  %v126 = vmul.f32 %v112, %v125
  %v127 = vmul.f32 %v115, 3.8918573e-05
  %v128 = vadd.f32 %v127, 0.001143296
  %v129 = vmul.f32 %v115, %v128
  %v130 = vadd.f32 %v129, 0.014752088
  %v131 = vmul.f32 %v115, %v130
  %v132 = vadd.f32 %v131, 0.112945676
  %v133 = vmul.f32 %v115, %v132
  %v134 = vadd.f32 %v133, 0.4994258
  %v135 = vmul.f32 %v115, %v134
  %v136 = vadd.f32 %v135, 1.0
  %v137 = vrcp.pop %v136
  %v138 = vmul.f32 %v136, %v137
  %v139 = vsub.f32 1.0, %v138
  %v140 = vmul.f32 %v137, %v139
  %v141 = vadd.f32 %v137, %v140
  %vm142 = vweird.f32 %v136
  %vm143 = vweird.f32 %v137
  %vm144 = vmor %vm142, %vm143
  %v145 = vsel %vm144, %v137, %v141
  %v146 = vand.u32 2147483647, %v136
  %vm147 = vcmp.eq.f32.partialorder %v146, 8.507059e+37
  %v148 = vand.u32 %v136, 2147483648
  %v149 = vor.u32 1.1754944e-38, %v148
  %v150 = vsel %vm147, %v149, %v145
  %v151 = vmul.f32 %v126, %v150
  %v152 = vmin.f32 %v151, 1.0
  %v153 = vmax.f32 %v152, -1.0
  %v154 = vmul.f32 %v113, %v113
  %v155 = vmin.f32 16.0, %v154
  %v156 = vmul.f32 %v155, 2.1237322e-06
  %v157 = vadd.f32 %v156, 0.00028619796
  %v158 = vmul.f32 %v155, %v157
  %v159 = vadd.f32 %v158, 0.0036580483
  %v160 = vmul.f32 %v155, %v159
  %v161 = vadd.f32 %v160, 0.05243302
  %v162 = vmul.f32 %v155, %v161
  %v163 = vadd.f32 %v162, 0.18741608
  %v164 = vmul.f32 %v155, %v163
  %v165 = vadd.f32 %v164, 1.1283791
  %v166 = vmul.f32 %v113, %v165
  %v167 = vmul.f32 %v155, 3.8918573e-05
  %v168 = vadd.f32 %v167, 0.001143296
  %v169 = vmul.f32 %v155, %v168
  %v170 = vadd.f32 %v169, 0.014752088
  %v171 = vmul.f32 %v155, %v170
  %v172 = vadd.f32 %v171, 0.112945676
  %v173 = vmul.f32 %v155, %v172
  %v174 = vadd.f32 %v173, 0.4994258
  %v175 = vmul.f32 %v155, %v174
  %v176 = vadd.f32 %v175, 1.0
  %v177 = vrcp.pop %v176
  %v178 = vmul.f32 %v176, %v177
  %v179 = vsub.f32 1.0, %v178
  %v180 = vmul.f32 %v177, %v179
  %v181 = vadd.f32 %v177, %v180
  %vm182 = vweird.f32 %v176
  %vm183 = vweird.f32 %v177
  %vm184 = vmor %vm182, %vm183
  %v185 = vsel %vm184, %v177, %v181
  %v186 = vand.u32 2147483647, %v176
  %vm187 = vcmp.eq.f32.partialorder %v186, 8.507059e+37
  %v188 = vand.u32 %v176, 2147483648
  %v189 = vor.u32 1.1754944e-38, %v188
  %v190 = vsel %vm187, %v189, %v185
  %v191 = vmul.f32 %v166, %v190
  %v192 = vmin.f32 %v191, 1.0
  %v193 = vmax.f32 %v192, -1.0
  %v194 = vadd.f32 %v153, 1.0
  %v195 = vadd.f32 %v193, 1.0
  %v196 = vmul.f32 %v110, %v194
  %v197 = vmul.f32 %v111, %v195
  %v198 = vpack.c.bf16 %v197, %v196
  %v199 = vld [vmem:[%s3] sm:$0xf]
  %v200 = vld [vmem:[%s3 + $0x4] sm:$0xf]
  %v201 = vld [vmem:[%s3 + $0x8] sm:$0xf]
  %v202 = vld [vmem:[%s3 + $0xc] sm:$0xf]
  %v203 = vld [vmem:[%s3 + $0x10] sm:$0xf]
  %v204 = vld [vmem:[%s3 + $0x14] sm:$0xf]
  %v205 = vld [vmem:[%s3 + $0x18] sm:$0xf]
  %v206 = vld [vmem:[%s3 + $0x1c] sm:$0xf]
  %v207 = vld [vmem:[%s3 + $0x20] sm:$0xf]
  %v208 = vld [vmem:[%s3 + $0x24] sm:$0xf]
  %v209 = vld [vmem:[%s3 + $0x28] sm:$0xf]
  %v210 = vld [vmem:[%s3 + $0x2c] sm:$0xf]
  %v211 = vld [vmem:[%s3 + $0x30] sm:$0xf]
  %v212 = vld [vmem:[%s3 + $0x34] sm:$0xf]
  %v213 = vld [vmem:[%s3 + $0x38] sm:$0xf]
  %v214 = vld [vmem:[%s3 + $0x3c] sm:$0xf]
  %v215 = vld [vmem:[%s4] sm:$0x1]
  %v217 = vperm.slane %v215, 0
  %v235 = vunpack.c.l.b16 %v199
  %v236 = vunpack.c.l.b16 %v200
  %v237 = vunpack.c.l.b16 %v201
  %v238 = vunpack.c.l.b16 %v202
  %v239 = vunpack.c.l.b16 %v203
  %v240 = vunpack.c.l.b16 %v204
  %v241 = vunpack.c.l.b16 %v205
  %v242 = vunpack.c.l.b16 %v206
  %v243 = vunpack.c.l.b16 %v207
  %v244 = vunpack.c.l.b16 %v208
  %v245 = vunpack.c.l.b16 %v209
  %v246 = vunpack.c.l.b16 %v210
  %v247 = vunpack.c.l.b16 %v211
  %v248 = vunpack.c.l.b16 %v212
  %v249 = vunpack.c.l.b16 %v213
  %v250 = vunpack.c.l.b16 %v214
  %v251 = vpack.c.b16 %v236, %v235
  %v252 = vpack.c.b16 %v238, %v237
  %v253 = vpack.c.b16 %v240, %v239
  %v254 = vpack.c.b16 %v242, %v241
  %v255 = vpack.c.b16 %v244, %v243
  %v256 = vpack.c.b16 %v246, %v245
  %v257 = vpack.c.b16 %v248, %v247
  %v258 = vpack.c.b16 %v250, %v249
  %267 = vmatpush.bf16.msra.mxu0 %v258
  %268 = vmatpush.bf16.msra.mxu0 %v257
  %269 = vmatpush.bf16.msra.mxu0 %v256
  %270 = vmatpush.bf16.msra.mxu0 %v255
  %271 = vmatpush.bf16.msra.mxu0 %v254
  %272 = vmatpush.bf16.msra.mxu0 %v253
  %273 = vmatpush.bf16.msra.mxu0 %v252
  %274 = vmatpush.bf16.msra.mxu0 %v251
  %275 = vmatmul.bf16.gmra.mxu0 %v198
  %v276 = vpop.f32.mrf.mxu0
  %v277 = vadd.f32 %v217, %v276
  %v278 = vpop.f32.mrf.mxu0
  %v279 = vadd.f32 %v217, %v278
  %280 = vdwg.mxu0
  %281 = vst [vmem:[%s5] sm:$0xff] %v277
  %282 = vst [vmem:[%s5 + $0x8] sm:$0xff] %v279
  // Predicated region
  $region22: #{mlp_forward.1} parent=0 // pred_check
    _
  $region23: #{mlp_forward.1} parent=0 // pred_check_branch
    %284 = sbr.rel (0) target = $region25
  $region24: #{mlp_forward.1} parent=0 // pred_region
    _
  $region25: #{mlp_forward.1} parent=0 // pred_fallthru
    _
  // Predicated region
  $region26: #{mlp_forward.1} parent=0 // pred_check
    _
  $region27: #{mlp_forward.1} parent=0 // pred_check_branch
    %286 = sbr.rel (0) target = $region29
  $region28: #{mlp_forward.1} parent=0 // pred_region
    _
  $region29: #{mlp_forward.1} parent=0 // pred_fallthru
    _

</llo_original>
